<compile_context>
chip_gen: v7x
topology: tpu7x:2x2x1
jax: 0.10.0
libtpu: 0.0.40
codegen_flags: <defaults>
</compile_context>

<pallas_src>
import jax
import jax.numpy as jnp
from jax.experimental import pallas as pl
from jax.experimental.pallas import tpu as pltpu

_LANE = 128


def _round_up(n, m):
    return ((n + m - 1) // m) * m


def _critic_kernel(x_ref, w1_ref, b1_ref, w2_ref, b2_ref, w3_ref, b3_ref, o_ref):
    # x tile for this grid step; cast to bf16 for the MXU (accumulate in f32).
    x = x_ref[...].astype(jnp.bfloat16)                          # [TB, S]

    # fc1 + relu  (bias add / ReLU kept in f32 on the VPU)
    h1 = jnp.dot(x, w1_ref[...], preferred_element_type=jnp.float32)
    h1 = jnp.maximum(h1 + b1_ref[...], 0.0)                      # [TB, Hp] f32

    # fc2 + relu
    h2 = jnp.dot(h1.astype(jnp.bfloat16), w2_ref[...],
                 preferred_element_type=jnp.float32)
    h2 = jnp.maximum(h2 + b2_ref[...], 0.0)                      # [TB, Hp] f32

    # fc3 (single output column): VPU multiply + XLU lane reduction keeps the
    # MXU free and avoids a 1-of-128 column matmul.
    h3 = jnp.sum(h2 * w3_ref[...], axis=-1, keepdims=True)       # [TB, 1]
    h3 = h3 + b3_ref[0, 0]                                       # scalar bias from SMEM
    o_ref[...] = jnp.maximum(h3, 0.0).astype(o_ref.dtype)        # final ReLU


def critic_forward(x, params, tile_b=1024):
    """x: [B, n_states] float32. params: dict of w1,b1,w2,b2,w3,b3 ([in,out] weights)."""
    B, S = x.shape
    H = params["w1"].shape[1]
    assert params["w1"].shape == (S, H)
    assert params["w2"].shape == (H, H)
    assert params["w3"].shape == (H, 1)

    Hp = _round_up(H, _LANE)                         # lane-dense hidden dim
    TB = min(_round_up(B, 8), _round_up(tile_b, 8))  # batch tile (multiple of 8)
    grid = (pl.cdiv(B, TB),)

    # Lane-dense, zero-padded weights. bf16 halves HBM traffic / vreg footprint
    # for the two real matmuls; padding columns/rows are inert through ReLU.
    w1 = jnp.zeros((S, Hp), jnp.bfloat16).at[:, :H].set(
        params["w1"].astype(jnp.bfloat16))
    w2 = jnp.zeros((Hp, Hp), jnp.bfloat16).at[:H, :H].set(
        params["w2"].astype(jnp.bfloat16))
    b1 = jnp.zeros((1, Hp), jnp.float32).at[0, :H].set(
        params["b1"].astype(jnp.float32))
    b2 = jnp.zeros((1, Hp), jnp.float32).at[0, :H].set(
        params["b2"].astype(jnp.float32))
    # fc3 weight as a lane-dense row; kept f32 since it feeds the VPU, not MXU.
    w3 = jnp.zeros((1, Hp), jnp.float32).at[0, :H].set(
        params["w3"][:, 0].astype(jnp.float32))
    b3 = params["b3"].reshape(1, 1).astype(jnp.float32)

    # Constant block index -> operand stays resident in VMEM across grid steps.
    resident = lambda shape: pl.BlockSpec(shape, lambda i: (0, 0))

    return pl.pallas_call(
        _critic_kernel,
        out_shape=jax.ShapeDtypeStruct((B, 1), jnp.float32),
        grid_spec=pltpu.PrefetchScalarGridSpec(
            num_scalar_prefetch=0,
            grid=grid,
            in_specs=[
                pl.BlockSpec((TB, S), lambda i: (i, 0)),            # x: tiled over batch
                resident((S, Hp)),                                  # w1 (bf16, resident)
                resident((1, Hp)),                                  # b1
                resident((Hp, Hp)),                                 # w2 (bf16, resident)
                resident((1, Hp)),                                  # b2
                resident((1, Hp)),                                  # w3 row (f32)
                pl.BlockSpec(memory_space=pltpu.MemorySpace.SMEM),  # b3 scalar in SMEM
            ],
            out_specs=pl.BlockSpec((TB, 1), lambda i: (i, 0)),
        ),
        compiler_params=pltpu.CompilerParams(
            dimension_semantics=("parallel",),   # v7x: shard batch grid over 2 TCs
        ),
    )(x, w1, b1, w2, b2, w3, b3)


def init_params(key, n_states, n_hiddens):
    """Deterministic init mimicking nn.Linear default U(-1/sqrt(fan_in), +1/sqrt(fan_in)).
    Weights are stored as [in, out] (transpose of PyTorch's [out, in])."""
    ks = jax.random.split(key, 6)

    def uniform(k, shape, fan_in):
        bound = 1.0 / jnp.sqrt(jnp.float32(fan_in))
        return jax.random.uniform(k, shape, jnp.float32, -bound, bound)

    return {
        "w1": uniform(ks[0], (n_states, n_hiddens), n_states),
        "b1": uniform(ks[1], (n_hiddens,), n_states),
        "w2": uniform(ks[2], (n_hiddens, n_hiddens), n_hiddens),
        "b2": uniform(ks[3], (n_hiddens,), n_hiddens),
        "w3": uniform(ks[4], (n_hiddens, 1), n_hiddens),
        "b3": uniform(ks[5], (1,), n_hiddens),
    }


def _reference_forward(x, params):
    h = jnp.maximum(x @ params["w1"] + params["b1"], 0.0)
    h = jnp.maximum(h @ params["w2"] + params["b2"], 0.0)
    h = jnp.maximum(h @ params["w3"] + params["b3"], 0.0)
    return h


if __name__ == "__main__":
    key = jax.random.PRNGKey(0)
    k_param, k_x = jax.random.split(key)

    batch = 8
    n_states = 16
    n_hiddens = 32

    params = init_params(k_param, n_states, n_hiddens)
    x = jax.random.normal(k_x, (batch, n_states), jnp.float32)

    out = critic_forward(x, params)
    out = jax.block_until_ready(out)

    ref = _reference_forward(x, params)
    assert out.shape == (batch, 1)
    # fc1/fc2 use bf16 MXU operands (f32 accumulation) -> tolerance looser than
    # a pure-f32 comparison.
    assert jnp.allclose(out, ref, atol=2e-2, rtol=2e-2)

    print("KERNEL_OK")
</pallas_src>

<mosaic_0001>
module attributes {stable_mosaic.version = 11 : i64} {
  func.func @_critic_kernel(%arg0: i32, %arg1: memref<8x16xf32, #tpu.memory_space<vmem>>, %arg2: memref<16x128xbf16, #tpu.memory_space<vmem>>, %arg3: memref<1x128xf32, #tpu.memory_space<vmem>>, %arg4: memref<128x128xbf16, #tpu.memory_space<vmem>>, %arg5: memref<1x128xf32, #tpu.memory_space<vmem>>, %arg6: memref<1x128xf32, #tpu.memory_space<vmem>>, %arg7: memref<1x1xf32, #tpu.memory_space<smem>>, %arg8: memref<8x1xf32, #tpu.memory_space<vmem>>) attributes {dimension_semantics = [#tpu.dimension_semantics<parallel>], iteration_bounds = array<i64: 1>, scalar_prefetch = 0 : i64, scratch_operands = 0 : i64, tpu.core_type = #tpu.core_type<tc>, window_params = [{transform_indices = @transform_0, window_bounds = array<i64: 8, 16>}, {pipeline_mode = #tpu.pipeline_mode<synchronous>, transform_indices = @transform_1, window_bounds = array<i64: 16, 128>}, {pipeline_mode = #tpu.pipeline_mode<synchronous>, transform_indices = @transform_2, window_bounds = array<i64: 1, 128>}, {pipeline_mode = #tpu.pipeline_mode<synchronous>, transform_indices = @transform_3, window_bounds = array<i64: 128, 128>}, {pipeline_mode = #tpu.pipeline_mode<synchronous>, transform_indices = @transform_4, window_bounds = array<i64: 1, 128>}, {pipeline_mode = #tpu.pipeline_mode<synchronous>, transform_indices = @transform_5, window_bounds = array<i64: 1, 128>}, {transform_indices = @transform_6, window_bounds = array<i64: 1, 1>}, {transform_indices = @transform_7, window_bounds = array<i64: 8, 1>}]} {
    %c0 = arith.constant 0 : index
    %c0_0 = arith.constant 0 : index
    %0 = vector.load %arg1[%c0, %c0_0] : memref<8x16xf32, #tpu.memory_space<vmem>>, vector<8x16xf32>
    %1 = arith.truncf %0 : vector<8x16xf32> to vector<8x16xbf16>
    %c0_1 = arith.constant 0 : index
    %c0_2 = arith.constant 0 : index
    %2 = vector.load %arg2[%c0_1, %c0_2] : memref<16x128xbf16, #tpu.memory_space<vmem>>, vector<16x128xbf16>
    %cst = arith.constant dense<0.000000e+00> : vector<8x128xf32>
    %3 = tpu.matmul %1, %2, %cst {dimension_numbers = #tpu.dot_dimension_numbers<[1], [0], [0], [1], [0, 0, 1, 1], [], []>} : vector<8x16xbf16>, vector<16x128xbf16>, vector<8x128xf32> -> vector<8x128xf32>
    %c0_3 = arith.constant 0 : index
    %c0_4 = arith.constant 0 : index
    %4 = vector.load %arg3[%c0_3, %c0_4] : memref<1x128xf32, #tpu.memory_space<vmem>>, vector<1x128xf32>
    %5 = vector.broadcast %4 : vector<1x128xf32> to vector<8x128xf32>
    %6 = arith.addf %3, %5 : vector<8x128xf32>
    %cst_5 = arith.constant 0.000000e+00 : f32
    %7 = vector.broadcast %cst_5 : f32 to vector<8x128xf32>
    %8 = arith.maximumf %6, %7 : vector<8x128xf32>
    %9 = arith.truncf %8 : vector<8x128xf32> to vector<8x128xbf16>
    %c0_6 = arith.constant 0 : index
    %c0_7 = arith.constant 0 : index
    %10 = vector.load %arg4[%c0_6, %c0_7] : memref<128x128xbf16, #tpu.memory_space<vmem>>, vector<128x128xbf16>
    %cst_8 = arith.constant dense<0.000000e+00> : vector<8x128xf32>
    %11 = tpu.matmul %9, %10, %cst_8 {dimension_numbers = #tpu.dot_dimension_numbers<[1], [0], [0], [1], [0, 0, 1, 1], [], []>} : vector<8x128xbf16>, vector<128x128xbf16>, vector<8x128xf32> -> vector<8x128xf32>
    %c0_9 = arith.constant 0 : index
    %c0_10 = arith.constant 0 : index
    %12 = vector.load %arg5[%c0_9, %c0_10] : memref<1x128xf32, #tpu.memory_space<vmem>>, vector<1x128xf32>
    %13 = vector.broadcast %12 : vector<1x128xf32> to vector<8x128xf32>
    %14 = arith.addf %11, %13 : vector<8x128xf32>
    %cst_11 = arith.constant 0.000000e+00 : f32
    %15 = vector.broadcast %cst_11 : f32 to vector<8x128xf32>
    %16 = arith.maximumf %14, %15 : vector<8x128xf32>
    %c0_12 = arith.constant 0 : index
    %c0_13 = arith.constant 0 : index
    %17 = vector.load %arg6[%c0_12, %c0_13] : memref<1x128xf32, #tpu.memory_space<vmem>>, vector<1x128xf32>
    %18 = vector.broadcast %17 : vector<1x128xf32> to vector<8x128xf32>
    %19 = arith.mulf %16, %18 : vector<8x128xf32>
    %cst_14 = arith.constant dense<0.000000e+00> : vector<8xf32>
    %20 = vector.multi_reduction <add>, %19, %cst_14 [1] : vector<8x128xf32> to vector<8xf32>
    %21 = vector.shape_cast %20 : vector<8xf32> to vector<8x1xf32>
    %c0_15 = arith.constant 0 : index
    %c0_16 = arith.constant 0 : index
    %22 = memref.load %arg7[%c0_15, %c0_16] : memref<1x1xf32, #tpu.memory_space<smem>>
    %23 = vector.broadcast %22 : f32 to vector<8x1xf32>
    %24 = arith.addf %21, %23 : vector<8x1xf32>
    %cst_17 = arith.constant 0.000000e+00 : f32
    %25 = vector.broadcast %cst_17 : f32 to vector<8x1xf32>
    %26 = arith.maximumf %24, %25 : vector<8x1xf32>
    %c0_18 = arith.constant 0 : index
    %c0_19 = arith.constant 0 : index
    %27 = vector.load %arg8[%c0_18, %c0_19] : memref<8x1xf32, #tpu.memory_space<vmem>>, vector<8x1xf32>
    tpu.vector_store %arg8[%c0_18, %c0_19], %26 {strides = array<i32>} : memref<8x1xf32, #tpu.memory_space<vmem>>, vector<8x1xf32>,
    return
  }
  func.func @transform_0(%arg0: i32) -> (i32, i32) {
    %c0_i32 = arith.constant 0 : i32
    %c0_i32_0 = arith.constant 0 : i32
    return %arg0, %c0_i32 : i32, i32
  }
  func.func @transform_1(%arg0: i32) -> (i32, i32) {
    %c0_i32 = arith.constant 0 : i32
    %c0_i32_0 = arith.constant 0 : i32
    %c0_i32_1 = arith.constant 0 : i32
    return %c0_i32, %c0_i32_0 : i32, i32
  }
  func.func @transform_2(%arg0: i32) -> (i32, i32) {
    %c0_i32 = arith.constant 0 : i32
    %c0_i32_0 = arith.constant 0 : i32
    %c0_i32_1 = arith.constant 0 : i32
    return %c0_i32, %c0_i32_0 : i32, i32
  }
  func.func @transform_3(%arg0: i32) -> (i32, i32) {
    %c0_i32 = arith.constant 0 : i32
    %c0_i32_0 = arith.constant 0 : i32
    %c0_i32_1 = arith.constant 0 : i32
    return %c0_i32, %c0_i32_0 : i32, i32
  }
  func.func @transform_4(%arg0: i32) -> (i32, i32) {
    %c0_i32 = arith.constant 0 : i32
    %c0_i32_0 = arith.constant 0 : i32
    %c0_i32_1 = arith.constant 0 : i32
    return %c0_i32, %c0_i32_0 : i32, i32
  }
  func.func @transform_5(%arg0: i32) -> (i32, i32) {
    %c0_i32 = arith.constant 0 : i32
    %c0_i32_0 = arith.constant 0 : i32
    %c0_i32_1 = arith.constant 0 : i32
    return %c0_i32, %c0_i32_0 : i32, i32
  }
  func.func @transform_6(%arg0: i32) -> (i32, i32) {
    %c0_i32 = arith.constant 0 : i32
    %c0_i32_0 = arith.constant 0 : i32
    %c0_i32_1 = arith.constant 0 : i32
    return %c0_i32, %c0_i32_0 : i32, i32
  }
  func.func @transform_7(%arg0: i32) -> (i32, i32) {
    %c0_i32 = arith.constant 0 : i32
    %c0_i32_0 = arith.constant 0 : i32
    return %arg0, %c0_i32 : i32, i32
  }
}

</mosaic_0001>

<llo_original>
// kernel: tpu_custom_call.1
$region0: #{tpu_custom_call.1}
  #allocation0 [shape = 'u32[]', space=smem, size = 0x4, offset = 0x4, fixed_abs, tag = 'smem constant byte address 0x4 - core index']
  #allocation1 [shape = 'u32[144,128]{1,0:T(1,128)}', space=vmem, size = 0x12000, scoped, tag = 'internal scratch']
  #allocation2 [shape = 'f32[1,1]{1,0:T(1,128)S(6)}', space=smem, size = 0x200, scoped, tag = 'scoped memory for tpu_custom_call.1']
  %s0 = inlined_call_operand.hbm [shape: f32[8,16], index: 0, kind: input, shape index: {}]
  %s1 = inlined_call_operand.hbm [shape: bf16[16,128], index: 1, kind: input, shape index: {}]
  %s2 = inlined_call_operand.vmem [shape: f32[1,128], index: 2, kind: input, shape index: {}]
  %s3 = inlined_call_operand.hbm [shape: bf16[128,128], index: 3, kind: input, shape index: {}]
  %s4 = inlined_call_operand.vmem [shape: f32[1,128], index: 4, kind: input, shape index: {}]
  %s5 = inlined_call_operand.vmem [shape: f32[1,128], index: 5, kind: input, shape index: {}]
  %s6 = inlined_call_operand.<no memory space> [shape: f32[1,1], index: 6, kind: input, shape index: {}]
  %s7 = inlined_call_operand.vmem [shape: f32[8,1], index: 7, kind: output, shape index: {}]
  %s8 = sld [smem:[#allocation0]]
  $region50: #{tpu_custom_call.1} parent=0
    _
  %s10 = ssub.s32 1, %s8
  %s11 = scalar_select 0, %s10, %s8
  %12 = sst [smem:[#allocation2]] %s6
  $region1: #{tpu_custom_call.1} parent=0
    #allocation3 [shape = 'u8[4096]{0}', space=vmem, size = 0x1000, scoped, tag = 'input window, operand 0, single buffered']
    #allocation4 [shape = 's32[1]{0}', space=sflag, size = 0x4, scoped, tag = 'scoped memory for tpu_custom_call.1']
    #allocation5 [shape = 'u8[4096]{0}', space=vmem, size = 0x1000, scoped, tag = 'input window, operand 1, single buffered']
    #allocation6 [shape = 's32[1]{0}', space=sflag, size = 0x4, scoped, tag = 'scoped memory for tpu_custom_call.1']
    #allocation7 [shape = 'u8[32768]{0}', space=vmem, size = 0x8000, scoped, tag = 'input window, operand 3, single buffered']
    %13 = vsyncpa [#allocation4], 0
    %14 = vsyncpa [#allocation6], 0
    // Predicated region
    $region2: #{tpu_custom_call.1} parent=1 // pred_check
      _
    $region3: #{tpu_custom_call.1} parent=1 // pred_check_branch
      %16 = sbr.rel (0) target = $region5
    $region4: #{tpu_custom_call.1} parent=1 // pred_region
      %s18 = ssub.s32 128, 128
      %19 = vsyncadd [#allocation4], %s18
      %s21 = sshll.u32 [#allocation3], 4
      %s22 = int_to_ptr.vmem [resolvable:$true] %s21
      %24 = dma.hbm_to_vmem [thread:$0]  %s0, 128, %s22, [#allocation4]
    $region5: #{tpu_custom_call.1} parent=1 // pred_fallthru
      _
    // Predicated region
    $region6: #{tpu_custom_call.1} parent=1 // pred_check
      _
    $region7: #{tpu_custom_call.1} parent=1 // pred_check_branch
      %26 = sbr.rel (0) target = $region9
    $region8: #{tpu_custom_call.1} parent=1 // pred_region
      %s28 = ssub.s32 128, 128
      %29 = vsyncadd [#allocation6], %s28
      %s30 = sshll.u32 [#allocation5], 4
      %s31 = int_to_ptr.vmem [resolvable:$true] %s30
      %36 = dma.hbm_to_vmem [thread:$0]  %s1, 128, %s31, [#allocation6], 64, 64, 4
    $region9: #{tpu_custom_call.1} parent=1 // pred_fallthru
      _
    // Predicated region
    $region10: #{tpu_custom_call.1} parent=1 // pred_check
      _
    $region11: #{tpu_custom_call.1} parent=1 // pred_check_branch
      %38 = sbr.rel (0) target = $region13
    $region12: #{tpu_custom_call.1} parent=1 // pred_region
      _
    $region13: #{tpu_custom_call.1} parent=1 // pred_fallthru
      _
    // Predicated region
    $region14: #{tpu_custom_call.1} parent=1 // pred_check
      _
    $region15: #{tpu_custom_call.1} parent=1 // pred_check_branch
      %40 = sbr.rel (0) target = $region17
    $region16: #{tpu_custom_call.1} parent=1 // pred_region
      %s42 = ssub.s32 1024, 1024
      %43 = vsyncadd [#allocation6], %s42
      %s44 = sshll.u32 [#allocation7], 4
      %s45 = int_to_ptr.vmem [resolvable:$true] %s44
      %50 = dma.hbm_to_vmem [thread:$0]  %s3, 1024, %s45, [#allocation6], 64, 64, 4
    $region17: #{tpu_custom_call.1} parent=1 // pred_fallthru
      _
    // Predicated region
    $region18: #{tpu_custom_call.1} parent=1 // pred_check
      _
    $region19: #{tpu_custom_call.1} parent=1 // pred_check_branch
      %52 = sbr.rel (0) target = $region21
    $region20: #{tpu_custom_call.1} parent=1 // pred_region
      _
    $region21: #{tpu_custom_call.1} parent=1 // pred_fallthru
      _
    // Predicated region
    $region22: #{tpu_custom_call.1} parent=1 // pred_check
      _
    $region23: #{tpu_custom_call.1} parent=1 // pred_check_branch
      %54 = sbr.rel (0) target = $region25
    $region24: #{tpu_custom_call.1} parent=1 // pred_region
      _
    $region25: #{tpu_custom_call.1} parent=1 // pred_fallthru
      _
    // Predicated region
    $region26: #{tpu_custom_call.1} parent=1 // pred_check
      _
    $region27: #{tpu_custom_call.1} parent=1 // pred_check_branch
      %56 = sbr.rel (0) target = $region29
    $region28: #{tpu_custom_call.1} parent=1 // pred_region
      _
    $region29: #{tpu_custom_call.1} parent=1 // pred_fallthru
      _
    // Predicated region
    $region30: #{tpu_custom_call.1} parent=1 // pred_check
      _
    $region31: #{tpu_custom_call.1} parent=1 // pred_check_branch
      %58 = sbr.rel (0) target = $region33
    $region32: #{tpu_custom_call.1} parent=1 // pred_region
      %59 = dma.done [#allocation4], 128
    $region33: #{tpu_custom_call.1} parent=1 // pred_fallthru
      _
    // Predicated region
    $region34: #{tpu_custom_call.1} parent=1 // pred_check
      _
    $region35: #{tpu_custom_call.1} parent=1 // pred_check_branch
      %61 = sbr.rel (0) target = $region37
    $region36: #{tpu_custom_call.1} parent=1 // pred_region
      %62 = dma.done [#allocation6], 128
    $region37: #{tpu_custom_call.1} parent=1 // pred_fallthru
      _
    // Predicated region
    $region38: #{tpu_custom_call.1} parent=1 // pred_check
      _
    $region39: #{tpu_custom_call.1} parent=1 // pred_check_branch
      %64 = sbr.rel (0) target = $region41
    $region40: #{tpu_custom_call.1} parent=1 // pred_region
      %65 = dma.done [#allocation6], 1024
    $region41: #{tpu_custom_call.1} parent=1 // pred_fallthru
      _
    %v67 = vld [vmem:[#allocation3] sm:$0xff]
    %v68 = vpack.c.bf16 %v67, %v67
    %v69 = vld [vmem:[#allocation5] sm:$0xf]
    %v70 = vld [vmem:[#allocation5 + $0x4] sm:$0xf]
    %v71 = vld [vmem:[%s2] sm:$0x1]
    %v73 = vlaneseq
    %v74 = vshrl.u32 %v73, 7
    %v75 = vsub.s32 0, %v74
    %v76 = vrot.slane %v71, %v75
    %v80 = vunpack.c.l.b16 %v69
    %v81 = vunpack.c.l.b16 %v70
    %v82 = vpack.c.b16 %v81, %v80
    %vm84 = vcmask 130048
    %v86 = vsel %vm84, %v68, 0
    %88 = vmatprep.subr.bf16.mxu0 0
    %89 = vmatpush1.bf16.msra.mxu0 %v82
    %90 = vmatprep.subr.bf16.mxu0 0
    %91 = vmatpush1.bf16.msra.mxu0 0
    %92 = vmatprep.subr.bf16.mxu0 0
    %93 = vmatpush1.bf16.msra.mxu0 0
    %94 = vmatprep.subr.bf16.mxu0 0
    %95 = vmatpush1.bf16.msra.mxu0 0
    %96 = vmatprep.subr.bf16.mxu0 0
    %97 = vmatpush1.bf16.msra.mxu0 0
    %98 = vmatprep.subr.bf16.mxu0 0
    %99 = vmatpush1.bf16.msra.mxu0 0
    %100 = vmatprep.subr.bf16.mxu0 0
    %101 = vmatpush1.bf16.msra.mxu0 0
    %102 = vmatprep.subr.bf16.mxu0 0
    %103 = vmatpush1.bf16.msra.mxu0 0
    %104 = vmatprep.subr.bf16.mxu0 0
    %105 = vmatpush1.bf16.msra.mxu0 0
    %106 = vmatprep.subr.bf16.mxu0 0
    %107 = vmatpush1.bf16.msra.mxu0 0
    %108 = vmatprep.subr.bf16.mxu0 0
    %109 = vmatpush1.bf16.msra.mxu0 0
    %110 = vmatprep.subr.bf16.mxu0 0
    %111 = vmatpush1.bf16.msra.mxu0 0
    %112 = vmatprep.subr.bf16.mxu0 0
    %113 = vmatpush1.bf16.msra.mxu0 0
    %114 = vmatprep.subr.bf16.mxu0 0
    %115 = vmatpush1.bf16.msra.mxu0 0
    %116 = vmatprep.subr.bf16.mxu0 0
    %117 = vmatpush1.bf16.msra.mxu0 0
    %118 = vmatprep.subr.bf16.mxu0 0
    %119 = vmatpush1.bf16.msra.mxu0 0
    %120 = vmatprep.mubr.bf16.mxu0 0
    %121 = vmatmul.mubr.bf16.gmra.mrb[0].mxu0 %v86
    %v122 = vpop.f32.mrb[0].mxu0
    %v123 = vadd.f32 %v76, %v122
    %v124 = vpop.f32.mrb[0].mxu0
    %v125 = vpop.f32.mrb[0].mxu0
    %v126 = vpop.f32.mrb[0].mxu0
    %127 = vdwg.mxu0
    %v128 = vmax.f32 %v123, 0.0
    %v129 = vpack.c.bf16 %v128, %v128
    %v130 = vld [vmem:[#allocation7] sm:$0xf]
    %v131 = vld [vmem:[#allocation7 + $0x4] sm:$0xf]
    %v132 = vld [vmem:[#allocation7 + $0x8] sm:$0xf]
    %v133 = vld [vmem:[#allocation7 + $0xc] sm:$0xf]
    %v134 = vld [vmem:[#allocation7 + $0x10] sm:$0xf]
    %v135 = vld [vmem:[#allocation7 + $0x14] sm:$0xf]
    %v136 = vld [vmem:[#allocation7 + $0x18] sm:$0xf]
    %v137 = vld [vmem:[#allocation7 + $0x1c] sm:$0xf]
    %v138 = vld [vmem:[#allocation7 + $0x20] sm:$0xf]
    %v139 = vld [vmem:[#allocation7 + $0x24] sm:$0xf]
    %v140 = vld [vmem:[#allocation7 + $0x28] sm:$0xf]
    %v141 = vld [vmem:[#allocation7 + $0x2c] sm:$0xf]
    %v142 = vld [vmem:[#allocation7 + $0x30] sm:$0xf]
    %v143 = vld [vmem:[#allocation7 + $0x34] sm:$0xf]
    %v144 = vld [vmem:[#allocation7 + $0x38] sm:$0xf]
    %v145 = vld [vmem:[#allocation7 + $0x3c] sm:$0xf]
    %v146 = vld [vmem:[%s4] sm:$0x1]
    %v148 = vlaneseq
    %v149 = vshrl.u32 %v148, 7
    %v150 = vsub.s32 0, %v149
    %v151 = vrot.slane %v146, %v150
    %v169 = vunpack.c.l.b16 %v130
    %v170 = vunpack.c.l.b16 %v131
    %v171 = vunpack.c.l.b16 %v132
    %v172 = vunpack.c.l.b16 %v133
    %v173 = vunpack.c.l.b16 %v134
    %v174 = vunpack.c.l.b16 %v135
    %v175 = vunpack.c.l.b16 %v136
    %v176 = vunpack.c.l.b16 %v137
    %v177 = vunpack.c.l.b16 %v138
    %v178 = vunpack.c.l.b16 %v139
    %v179 = vunpack.c.l.b16 %v140
    %v180 = vunpack.c.l.b16 %v141
    %v181 = vunpack.c.l.b16 %v142
    %v182 = vunpack.c.l.b16 %v143
    %v183 = vunpack.c.l.b16 %v144
    %v184 = vunpack.c.l.b16 %v145
    %v185 = vpack.c.b16 %v170, %v169
    %v186 = vpack.c.b16 %v172, %v171
    %v187 = vpack.c.b16 %v174, %v173
    %v188 = vpack.c.b16 %v176, %v175
    %v189 = vpack.c.b16 %v178, %v177
    %v190 = vpack.c.b16 %v180, %v179
    %v191 = vpack.c.b16 %v182, %v181
    %v192 = vpack.c.b16 %v184, %v183
    %201 = vmatprep.subr.bf16.mxu0 0
    %202 = vmatpush1.bf16.msra.mxu0 %v185
    %203 = vmatprep.subr.bf16.mxu0 0
    %204 = vmatpush1.bf16.msra.mxu0 %v186
    %205 = vmatprep.subr.bf16.mxu0 0
    %206 = vmatpush1.bf16.msra.mxu0 %v187
    %207 = vmatprep.subr.bf16.mxu0 0
    %208 = vmatpush1.bf16.msra.mxu0 %v188
    %209 = vmatprep.subr.bf16.mxu0 0
    %210 = vmatpush1.bf16.msra.mxu0 %v189
    %211 = vmatprep.subr.bf16.mxu0 0
    %212 = vmatpush1.bf16.msra.mxu0 %v190
    %213 = vmatprep.subr.bf16.mxu0 0
    %214 = vmatpush1.bf16.msra.mxu0 %v191
    %215 = vmatprep.subr.bf16.mxu0 0
    %216 = vmatpush1.bf16.msra.mxu0 %v192
    %217 = vmatprep.subr.bf16.mxu0 0
    %218 = vmatpush1.bf16.msra.mxu0 0
    %219 = vmatprep.subr.bf16.mxu0 0
    %220 = vmatpush1.bf16.msra.mxu0 0
    %221 = vmatprep.subr.bf16.mxu0 0
    %222 = vmatpush1.bf16.msra.mxu0 0
    %223 = vmatprep.subr.bf16.mxu0 0
    %224 = vmatpush1.bf16.msra.mxu0 0
    %225 = vmatprep.subr.bf16.mxu0 0
    %226 = vmatpush1.bf16.msra.mxu0 0
    %227 = vmatprep.subr.bf16.mxu0 0
    %228 = vmatpush1.bf16.msra.mxu0 0
    %229 = vmatprep.subr.bf16.mxu0 0
    %230 = vmatpush1.bf16.msra.mxu0 0
    %231 = vmatprep.subr.bf16.mxu0 0
    %232 = vmatpush1.bf16.msra.mxu0 0
    %233 = vmatprep.mubr.bf16.mxu0 0
    %234 = vmatmul.mubr.bf16.gmra.mrb[0].mxu0 %v129
    %v235 = vpop.f32.mrb[0].mxu0
    %v236 = vadd.f32 %v151, %v235
    %v237 = vpop.f32.mrb[0].mxu0
    %v238 = vpop.f32.mrb[0].mxu0
    %v239 = vpop.f32.mrb[0].mxu0
    %240 = vdwg.mxu0
    %v241 = vmax.f32 %v236, 0.0
    %v242 = vld [vmem:[%s5] sm:$0x1]
    %v244 = vlaneseq
    %v245 = vshrl.u32 %v244, 7
    %v246 = vsub.s32 0, %v245
    %v247 = vrot.slane %v242, %v246
    %v249 = vmul.f32 %v241, %v247
    %250 = vadd.xlane.f32.xlu0 %v249
    %v251 = vpop.xlane.xlu0 %250
    %s252 = sld [smem:[#allocation2]]
    %v253 = vstv %s252
    %v254 = vadd.f32 %v251, %v253
    %v255 = vmax.f32 %v254, 0.0
    %vm256 = vcmask 7168
    %257 = vst.msk [vmem:[%s7] sm:$0xff] %vm256, %v255
    // Predicated region
    $region42: #{tpu_custom_call.1} parent=1 // pred_check
      _
    $region43: #{tpu_custom_call.1} parent=1 // pred_check_branch
      %259 = sbr.rel (0) target = $region45
    $region44: #{tpu_custom_call.1} parent=1 // pred_region
      _
    $region45: #{tpu_custom_call.1} parent=1 // pred_fallthru
      _
    // Predicated region
    $region46: #{tpu_custom_call.1} parent=1 // pred_check
      _
    $region47: #{tpu_custom_call.1} parent=1 // pred_check_branch
      %261 = sbr.rel (0) target = $region49
    $region48: #{tpu_custom_call.1} parent=1 // pred_region
      _
    $region49: #{tpu_custom_call.1} parent=1 // pred_fallthru
      _
    %262 = vsyncpa [#allocation4], 1
    %263 = vsyncpa [#allocation6], 1

</llo_original>
